<compile_context>
chip_gen: v5e
topology: v5e:2x2
jax: 0.10.0
libtpu: 0.0.40
codegen_flags: <defaults>
</compile_context>

<pallas_src>
import functools
import math

import jax
import jax.numpy as jnp
from jax.experimental import pallas as pl
from jax.experimental.pallas import tpu as pltpu

_NEG_INF = -1e30  # finite "minus infinity": exp() underflows to 0, no inf-inf NaNs


def _round_up(v, mult):
    return ((v + mult - 1) // mult) * mult


# ---------------------------------------------------------------------------
# Fused kernel: grid = (batch tile i, pass p in {0,1}, class tile j)
# ---------------------------------------------------------------------------
def _amsoftmax_kernel(x_ref, w_ref, o_ref, xn_s, z_s, m_s, l_s,
                      *, s, m, n_classes, tc):
    p = pl.program_id(1)   # 0: matmul + running stats, 1: finalize
    j = pl.program_id(2)   # class tile index

    @pl.when(jnp.logical_and(p == 0, j == 0))
    def _():
        # Normalize the x tile once per batch tile (resident across passes)
        # and reset the running statistics.  F.normalize semantics:
        # v / max(||v||, 1e-12) == v * rsqrt(max(||v||^2, 1e-24)).
        x = x_ref[...].astype(jnp.float32)
        xsq = jnp.sum(x * x, axis=-1, keepdims=True)
        xn_s[...] = x * jax.lax.rsqrt(jnp.maximum(xsq, 1e-24))
        m_s[...] = jnp.full(m_s.shape, _NEG_INF, jnp.float32)
        l_s[...] = jnp.zeros(l_s.shape, jnp.float32)

    @pl.when(p == 0)
    def _():
        # Normalize the weight tile (VPU work, tiny vs. the matmul) and compute
        # z = s * cosine, contracting D with D directly (no XLU transpose).
        w = w_ref[...].astype(jnp.float32)
        wsq = jnp.sum(w * w, axis=-1, keepdims=True)
        wn = w * jax.lax.rsqrt(jnp.maximum(wsq, 1e-24))
        z = s * jax.lax.dot_general(
            xn_s[...], wn,
            dimension_numbers=(((1,), (1,)), ((), ())),
            preferred_element_type=jnp.float32)          # (tb, tc)
        z_s[j] = z                                       # keep logits in VMEM

        # Flash-style running max / sum-of-exp; mask padded class columns.
        col = jax.lax.broadcasted_iota(jnp.int32, z.shape, 1) + j * tc
        zm = jnp.where(col < n_classes, z, _NEG_INF)
        m_prev = m_s[...]                                           # (tb, 1)
        m_new = jnp.maximum(m_prev, jnp.max(zm, axis=-1, keepdims=True))
        alpha = jnp.exp(m_prev - m_new)
        l_s[...] = alpha * l_s[...] + jnp.sum(
            jnp.exp(zm - m_new), axis=-1, keepdims=True)
        m_s[...] = m_new

    @pl.when(p == 1)
    def _():
        # out = (cos - m)*s - am_logsumexp
        #     = z - s*m - M - log((S - e) + e*exp(-s*m))
        #     = z - s*m - M - log(S - e*(1 - exp(-s*m))),   e = exp(z - M)
        cfac = math.exp(-float(s) * float(m))   # constant-folded margin exp
        z = z_s[j]
        M = m_s[...]                            # (tb, 1) row max of z
        S = l_s[...]                            # (tb, 1) sum exp(z - M)
        e = jnp.exp(z - M)
        o_ref[...] = (z - (s * m)) - M - jnp.log(S - e * (1.0 - cfac))


# ---------------------------------------------------------------------------
# Public forward: x (B, in_features), weight (C, in_features) -> (B, C)
# ---------------------------------------------------------------------------
def amsoftmax_forward(x, weight, *, s=30.0, m=0.4, tb=None, tc=None):
    B, D = x.shape
    C, D2 = weight.shape
    assert D == D2

    # Class tile: lane-dense multiple of 128, <= 512, and keep the (tc, D)
    # weight tile (double-buffered) modest even for large embeddings.
    Cp128 = _round_up(C, 128)
    if tc is None:
        tc_cap_by_d = max(128, ((1 << 20) // max(D, 1)) // 128 * 128)
        tc = max(128, min(512, Cp128, tc_cap_by_d))
    Cp = _round_up(C, tc)
    nc = Cp // tc

    # Batch tile: multiple of 8, <= 256, sized so the resident (nc, tb, tc)
    # f32 logits slab stays under ~12 MiB of VMEM (fits v5e/v6e/v7x limits).
    if tb is None:
        slab_budget = 12 << 20
        tb_cap_by_slab = max(8, (slab_budget // (4 * Cp)) // 8 * 8)
        tb = min(256, _round_up(B, 8), tb_cap_by_slab)
    Bp = _round_up(B, tb)
    nb = Bp // tb

    # Keep everything in f32: s=30 amplifies low-precision cosine error.
    xf = x.astype(jnp.float32)
    wf = weight.astype(jnp.float32)
    xp = xf if Bp == B else jnp.pad(xf, ((0, Bp - B), (0, 0)))
    wp = wf if Cp == C else jnp.pad(wf, ((0, Cp - C), (0, 0)))

    kernel = functools.partial(
        _amsoftmax_kernel, s=float(s), m=float(m), n_classes=int(C), tc=int(tc))

    # Rough VMEM requirement (slab + scratch + double-buffered blocks) with
    # headroom, clamped to a range that is safe on v5e/v6e/v7x.
    slab_bytes = nc * tb * tc * 4
    other_bytes = 4 * (tb * D + 2 * (tb * D + tc * D + tb * tc) + 4 * tb)
    vmem_limit = int(min(max(32 << 20, slab_bytes + other_bytes + (8 << 20)),
                         48 << 20))

    out = pl.pallas_call(
        kernel,
        out_shape=jax.ShapeDtypeStruct((Bp, Cp), jnp.float32),
        grid_spec=pltpu.PrefetchScalarGridSpec(
            num_scalar_prefetch=0,
            grid=(nb, 2, nc),
            in_specs=[
                # x tile: resident across both passes of a batch tile.
                pl.BlockSpec((tb, D), lambda i, p, j: (i, 0)),
                # w tile: streamed during pass 0; during pass 1 pinned to the
                # last pass-0 block so no extra DMAs are issued.
                pl.BlockSpec((tc, D),
                             lambda i, p, j: ((1 - p) * j + p * (nc - 1), 0)),
            ],
            # Output block stays at (i, 0) through pass 0 (never written back
            # until pass 1 writes it), then streams lane-dense tiles in pass 1.
            out_specs=pl.BlockSpec((tb, tc), lambda i, p, j: (i, p * j)),
            scratch_shapes=[
                pltpu.VMEM((tb, D), jnp.float32),       # normalized x tile
                pltpu.VMEM((nc, tb, tc), jnp.float32),  # z = s*cos slab
                pltpu.VMEM((tb, 1), jnp.float32),       # running row max M
                pltpu.VMEM((tb, 1), jnp.float32),       # running sum-exp S
            ],
        ),
        compiler_params=pltpu.CompilerParams(
            dimension_semantics=("parallel", "arbitrary", "arbitrary"),
            vmem_limit_bytes=vmem_limit),
    )(xp, wp)
    return out[:B, :C]


# ---------------------------------------------------------------------------
# Pure-JAX reference (mirrors the PyTorch module exactly).
# ---------------------------------------------------------------------------
def _reference(x, weight, s=30.0, m=0.4):
    xn = x / jnp.maximum(jnp.linalg.norm(x, axis=-1, keepdims=True), 1e-12)
    wn = weight / jnp.maximum(
        jnp.linalg.norm(weight, axis=-1, keepdims=True), 1e-12)
    logits = xn @ wn.T
    scaled = (logits - m) * s
    max_x = jnp.max(logits, axis=-1, keepdims=True)
    e = jnp.exp(s * (logits - max_x))
    term1 = jnp.exp(s * (logits - (max_x + m)))
    term2 = jnp.sum(e, axis=-1, keepdims=True) - e
    return scaled - (s * max_x + jnp.log(term2 + term1))


if __name__ == "__main__":
    # Small shapes consistent with the module's forward:
    # batch=8 embeddings of size in_features=32, n_classes=16.
    B, in_features, n_classes = 8, 32, 16
    s_param, m_param = 30.0, 0.4

    key = jax.random.PRNGKey(0)
    kx, kw = jax.random.split(key)
    x = jax.random.normal(kx, (B, in_features), dtype=jnp.float32)
    # Deterministic nn.Linear-style weight init (kaiming-uniform-ish bound).
    bound = 1.0 / (in_features ** 0.5)
    weight = jax.random.uniform(
        kw, (n_classes, in_features), dtype=jnp.float32,
        minval=-bound, maxval=bound)

    out = amsoftmax_forward(x, weight, s=s_param, m=m_param)
    out = jax.block_until_ready(out)

    ref = _reference(x, weight, s=s_param, m=m_param)
    assert out.shape == (B, n_classes)
    assert jnp.allclose(out, ref, atol=1e-3, rtol=1e-4), "mismatch vs reference"

    print("KERNEL_OK")
</pallas_src>

<mosaic_0001>
module attributes {stable_mosaic.version = 11 : i64} {
  func.func @_amsoftmax_kernel(%arg0: i32, %arg1: i32, %arg2: i32, %arg3: memref<8x32xf32, #tpu.memory_space<vmem>>, %arg4: memref<128x32xf32, #tpu.memory_space<vmem>>, %arg5: memref<8x128xf32, #tpu.memory_space<vmem>>, %arg6: memref<8x32xf32, #tpu.memory_space<vmem>>, %arg7: memref<1x8x128xf32, #tpu.memory_space<vmem>>, %arg8: memref<8x1xf32, #tpu.memory_space<vmem>>, %arg9: memref<8x1xf32, #tpu.memory_space<vmem>>) attributes {dimension_semantics = [#tpu.dimension_semantics<parallel>, #tpu.dimension_semantics<arbitrary>, #tpu.dimension_semantics<arbitrary>], iteration_bounds = array<i64: 1, 2, 1>, scalar_prefetch = 0 : i64, scratch_operands = 4 : i64, tpu.core_type = #tpu.core_type<tc>, window_params = [{transform_indices = @transform_0, window_bounds = array<i64: 8, 32>}, {transform_indices = @transform_1, window_bounds = array<i64: 128, 32>}, {transform_indices = @transform_2, window_bounds = array<i64: 8, 128>}]} {
    %c0_i32 = arith.constant 0 : i32
    %0 = arith.cmpi eq, %arg1, %c0_i32 : i32
    %c0_i32_0 = arith.constant 0 : i32
    %1 = arith.cmpi eq, %arg2, %c0_i32_0 : i32
    %2 = arith.andi %0, %1 : i1
    %3 = arith.extui %2 : i1 to i32
    %c0_i32_1 = arith.constant 0 : i32
    %4 = arith.cmpi ne, %3, %c0_i32_1 : i32
    scf.if %4 {
      %c0 = arith.constant 0 : index
      %c0_5 = arith.constant 0 : index
      %11 = vector.load %arg3[%c0, %c0_5] : memref<8x32xf32, #tpu.memory_space<vmem>>, vector<8x32xf32>
      %12 = arith.mulf %11, %11 : vector<8x32xf32>
      %cst = arith.constant dense<0.000000e+00> : vector<8xf32>
      %13 = vector.multi_reduction <add>, %12, %cst [1] : vector<8x32xf32> to vector<8xf32>
      %14 = vector.shape_cast %13 : vector<8xf32> to vector<8x1xf32>
      %cst_6 = arith.constant 1.000000e-24 : f32
      %15 = vector.broadcast %cst_6 : f32 to vector<8x1xf32>
      %16 = arith.maximumf %14, %15 : vector<8x1xf32>
      %17 = math.rsqrt %16 : vector<8x1xf32>
      %18 = vector.broadcast %17 : vector<8x1xf32> to vector<8x32xf32>
      %19 = arith.mulf %11, %18 : vector<8x32xf32>
      %c0_7 = arith.constant 0 : index
      %c0_8 = arith.constant 0 : index
      %20 = vector.load %arg6[%c0_7, %c0_8] : memref<8x32xf32, #tpu.memory_space<vmem>>, vector<8x32xf32>
      tpu.vector_store %arg6[%c0_7, %c0_8], %19 {strides = array<i32>} : memref<8x32xf32, #tpu.memory_space<vmem>>, vector<8x32xf32>,
      %cst_9 = arith.constant -1.000000e+30 : f32
      %21 = vector.broadcast %cst_9 : f32 to vector<8x1xf32>
      %c0_10 = arith.constant 0 : index
      %c0_11 = arith.constant 0 : index
      %22 = vector.load %arg8[%c0_10, %c0_11] : memref<8x1xf32, #tpu.memory_space<vmem>>, vector<8x1xf32>
      tpu.vector_store %arg8[%c0_10, %c0_11], %21 {strides = array<i32>} : memref<8x1xf32, #tpu.memory_space<vmem>>, vector<8x1xf32>,
      %cst_12 = arith.constant 0.000000e+00 : f32
      %23 = vector.broadcast %cst_12 : f32 to vector<8x1xf32>
      %c0_13 = arith.constant 0 : index
      %c0_14 = arith.constant 0 : index
      %24 = vector.load %arg9[%c0_13, %c0_14] : memref<8x1xf32, #tpu.memory_space<vmem>>, vector<8x1xf32>
      tpu.vector_store %arg9[%c0_13, %c0_14], %23 {strides = array<i32>} : memref<8x1xf32, #tpu.memory_space<vmem>>, vector<8x1xf32>,
    } else {
    }
    %c0_i32_2 = arith.constant 0 : i32
    %5 = arith.cmpi eq, %arg1, %c0_i32_2 : i32
    %6 = arith.extui %5 : i1 to i32
    %c0_i32_3 = arith.constant 0 : i32
    %7 = arith.cmpi ne, %6, %c0_i32_3 : i32
    scf.if %7 {
      %c0 = arith.constant 0 : index
      %c0_5 = arith.constant 0 : index
      %11 = vector.load %arg4[%c0, %c0_5] : memref<128x32xf32, #tpu.memory_space<vmem>>, vector<128x32xf32>
      %12 = arith.mulf %11, %11 : vector<128x32xf32>
      %cst = arith.constant dense<0.000000e+00> : vector<128xf32>
      %13 = vector.multi_reduction <add>, %12, %cst [1] : vector<128x32xf32> to vector<128xf32>
      %14 = vector.shape_cast %13 : vector<128xf32> to vector<128x1xf32>
      %cst_6 = arith.constant 1.000000e-24 : f32
      %15 = vector.broadcast %cst_6 : f32 to vector<128x1xf32>
      %16 = arith.maximumf %14, %15 : vector<128x1xf32>
      %17 = math.rsqrt %16 : vector<128x1xf32>
      %18 = vector.broadcast %17 : vector<128x1xf32> to vector<128x32xf32>
      %19 = arith.mulf %11, %18 : vector<128x32xf32>
      %c0_7 = arith.constant 0 : index
      %c0_8 = arith.constant 0 : index
      %20 = vector.load %arg6[%c0_7, %c0_8] : memref<8x32xf32, #tpu.memory_space<vmem>>, vector<8x32xf32>
      %cst_9 = arith.constant dense<0.000000e+00> : vector<8x128xf32>
      %21 = tpu.matmul %20, %19, %cst_9 {dimension_numbers = #tpu.dot_dimension_numbers<[1], [1], [0], [0], [0, 0, 1, 0], [], []>} : vector<8x32xf32>, vector<128x32xf32>, vector<8x128xf32> -> vector<8x128xf32>
      %cst_10 = arith.constant 3.000000e+01 : f32
      %22 = vector.broadcast %cst_10 : f32 to vector<8x128xf32>
      %23 = arith.mulf %22, %21 : vector<8x128xf32>
      %24 = arith.index_cast %arg2 : i32 to index
      %c0_11 = arith.constant 0 : index
      %c0_12 = arith.constant 0 : index
      %25 = vector.load %arg7[%24, %c0_11, %c0_12] : memref<1x8x128xf32, #tpu.memory_space<vmem>>, vector<1x8x128xf32>
      %26 = vector.shape_cast %25 : vector<1x8x128xf32> to vector<8x128xf32>
      %27 = vector.shape_cast %23 : vector<8x128xf32> to vector<1x8x128xf32>
      tpu.vector_store %arg7[%24, %c0_11, %c0_12], %27 {strides = array<i32>} : memref<1x8x128xf32, #tpu.memory_space<vmem>>, vector<1x8x128xf32>,
      %28 = tpu.iota {dimensions = array<i32: 1>} : vector<8x128xi32>
      %c128_i32 = arith.constant 128 : i32
      %29 = arith.muli %arg2, %c128_i32 : i32
      %30 = vector.broadcast %29 : i32 to vector<8x128xi32>
      %31 = arith.addi %28, %30 : vector<8x128xi32>
      %c16_i32 = arith.constant 16 : i32
      %32 = vector.broadcast %c16_i32 : i32 to vector<8x128xi32>
      %33 = arith.cmpi slt, %31, %32 : vector<8x128xi32>
      %cst_13 = arith.constant -1.000000e+30 : f32
      %34 = vector.broadcast %cst_13 : f32 to vector<8x128xf32>
      %35 = arith.select %33, %23, %34 : vector<8x128xi1>, vector<8x128xf32>
      %c0_14 = arith.constant 0 : index
      %c0_15 = arith.constant 0 : index
      %36 = vector.load %arg8[%c0_14, %c0_15] : memref<8x1xf32, #tpu.memory_space<vmem>>, vector<8x1xf32>
      %cst_16 = arith.constant dense<0xFF800000> : vector<8xf32>
      %37 = vector.multi_reduction <maximumf>, %35, %cst_16 [1] : vector<8x128xf32> to vector<8xf32>
      %38 = vector.shape_cast %37 : vector<8xf32> to vector<8x1xf32>
      %39 = arith.maximumf %36, %38 : vector<8x1xf32>
      %40 = arith.subf %36, %39 : vector<8x1xf32>
      %41 = math.exp %40 : vector<8x1xf32>
      %c0_17 = arith.constant 0 : index
      %c0_18 = arith.constant 0 : index
      %42 = vector.load %arg9[%c0_17, %c0_18] : memref<8x1xf32, #tpu.memory_space<vmem>>, vector<8x1xf32>
      %43 = arith.mulf %41, %42 : vector<8x1xf32>
      %44 = vector.broadcast %39 : vector<8x1xf32> to vector<8x128xf32>
      %45 = arith.subf %35, %44 : vector<8x128xf32>
      %46 = math.exp %45 : vector<8x128xf32>
      %cst_19 = arith.constant dense<0.000000e+00> : vector<8xf32>
      %47 = vector.multi_reduction <add>, %46, %cst_19 [1] : vector<8x128xf32> to vector<8xf32>
      %48 = vector.shape_cast %47 : vector<8xf32> to vector<8x1xf32>
      %49 = arith.addf %43, %48 : vector<8x1xf32>
      %c0_20 = arith.constant 0 : index
      %c0_21 = arith.constant 0 : index
      %50 = vector.load %arg9[%c0_20, %c0_21] : memref<8x1xf32, #tpu.memory_space<vmem>>, vector<8x1xf32>
      tpu.vector_store %arg9[%c0_20, %c0_21], %49 {strides = array<i32>} : memref<8x1xf32, #tpu.memory_space<vmem>>, vector<8x1xf32>,
      %c0_22 = arith.constant 0 : index
      %c0_23 = arith.constant 0 : index
      %51 = vector.load %arg8[%c0_22, %c0_23] : memref<8x1xf32, #tpu.memory_space<vmem>>, vector<8x1xf32>
      tpu.vector_store %arg8[%c0_22, %c0_23], %39 {strides = array<i32>} : memref<8x1xf32, #tpu.memory_space<vmem>>, vector<8x1xf32>,
    } else {
    }
    %c1_i32 = arith.constant 1 : i32
    %8 = arith.cmpi eq, %arg1, %c1_i32 : i32
    %9 = arith.extui %8 : i1 to i32
    %c0_i32_4 = arith.constant 0 : i32
    %10 = arith.cmpi ne, %9, %c0_i32_4 : i32
    scf.if %10 {
      %11 = arith.index_cast %arg2 : i32 to index
      %c0 = arith.constant 0 : index
      %c0_5 = arith.constant 0 : index
      %12 = vector.load %arg7[%11, %c0, %c0_5] : memref<1x8x128xf32, #tpu.memory_space<vmem>>, vector<1x8x128xf32>
      %13 = vector.shape_cast %12 : vector<1x8x128xf32> to vector<8x128xf32>
      %c0_6 = arith.constant 0 : index
      %c0_7 = arith.constant 0 : index
      %14 = vector.load %arg8[%c0_6, %c0_7] : memref<8x1xf32, #tpu.memory_space<vmem>>, vector<8x1xf32>
      %c0_8 = arith.constant 0 : index
      %c0_9 = arith.constant 0 : index
      %15 = vector.load %arg9[%c0_8, %c0_9] : memref<8x1xf32, #tpu.memory_space<vmem>>, vector<8x1xf32>
      %16 = vector.broadcast %14 : vector<8x1xf32> to vector<8x128xf32>
      %17 = arith.subf %13, %16 : vector<8x128xf32>
      %18 = math.exp %17 : vector<8x128xf32>
      %cst = arith.constant 1.200000e+01 : f32
      %19 = vector.broadcast %cst : f32 to vector<8x128xf32>
      %20 = arith.subf %13, %19 : vector<8x128xf32>
      %21 = vector.broadcast %14 : vector<8x1xf32> to vector<8x128xf32>
      %22 = arith.subf %20, %21 : vector<8x128xf32>
      %cst_10 = arith.constant 0.99999386 : f32
      %23 = vector.broadcast %cst_10 : f32 to vector<8x128xf32>
      %24 = arith.mulf %18, %23 : vector<8x128xf32>
      %25 = vector.broadcast %15 : vector<8x1xf32> to vector<8x128xf32>
      %26 = arith.subf %25, %24 : vector<8x128xf32>
      %27 = math.log %26 : vector<8x128xf32>
      %28 = arith.subf %22, %27 : vector<8x128xf32>
      %c0_11 = arith.constant 0 : index
      %c0_12 = arith.constant 0 : index
      %29 = vector.load %arg5[%c0_11, %c0_12] : memref<8x128xf32, #tpu.memory_space<vmem>>, vector<8x128xf32>
      tpu.vector_store %arg5[%c0_11, %c0_12], %28 {strides = array<i32>} : memref<8x128xf32, #tpu.memory_space<vmem>>, vector<8x128xf32>,
    } else {
    }
    return
  }
  func.func @transform_0(%arg0: i32, %arg1: i32, %arg2: i32) -> (i32, i32) {
    %c0_i32 = arith.constant 0 : i32
    %c0_i32_0 = arith.constant 0 : i32
    return %arg0, %c0_i32 : i32, i32
  }
  func.func @transform_1(%arg0: i32, %arg1: i32, %arg2: i32) -> (i32, i32) {
    %c1_i32 = arith.constant 1 : i32
    %0 = arith.subi %c1_i32, %arg1 : i32
    %1 = arith.muli %0, %arg2 : i32
    %c0_i32 = arith.constant 0 : i32
    %2 = arith.muli %arg1, %c0_i32 : i32
    %3 = arith.addi %1, %2 : i32
    %c0_i32_0 = arith.constant 0 : i32
    %c0_i32_1 = arith.constant 0 : i32
    return %3, %c0_i32_0 : i32, i32
  }
  func.func @transform_2(%arg0: i32, %arg1: i32, %arg2: i32) -> (i32, i32) {
    %0 = arith.muli %arg1, %arg2 : i32
    %c0_i32 = arith.constant 0 : i32
    return %arg0, %0 : i32, i32
  }
}

</mosaic_0001>

<llo_original>
// kernel: tpu_custom_call.1
$region0: #{tpu_custom_call.1}
  #allocation0 [shape = 'u32[]', space=smem, size = 0x4, offset = 0x4, fixed_abs, tag = 'smem constant byte address 0x4 - core index']
  #allocation1 [shape = 'u32[72,128]{1,0:T(1,128)}', space=vmem, size = 0x9000, scoped, tag = 'internal scratch']
  #allocation2 [shape = 'f32[8,32]{1,0:T(8,128)}', space=vmem, size = 0x1000, scoped, tag = 'scratch operand']
  #allocation3 [shape = 'f32[1,8,128]{2,1,0:T(8,128)}', space=vmem, size = 0x1000, scoped, tag = 'scratch operand']
  #allocation4 [shape = 'f32[8,1]{1,0:T(8,128)}', space=vmem, size = 0x1000, scoped, tag = 'scratch operand']
  #allocation5 [shape = 'f32[8,1]{1,0:T(8,128)}', space=vmem, size = 0x1000, scoped, tag = 'scratch operand']
  %s0 = inlined_call_operand.vmem [shape: f32[8,32], index: 0, kind: input, shape index: {}]
  %s1 = inlined_call_operand.vmem [shape: f32[128,32], index: 1, kind: input, shape index: {}]
  %s2 = inlined_call_operand.hbm [shape: f32[8,128], index: 2, kind: output, shape index: {}]
  %s3 = sld [smem:[#allocation0]]
  $region53: #{tpu_custom_call.1} parent=0
    _
  %s5 = ssub.s32 1, %s3
  %s6 = scalar_select 0, %s5, %s3
  $region1: #{tpu_custom_call.1} parent=0
    #allocation6 [shape = 'u8[8192]{0}', space=vmem, size = 0x2000, scoped, tag = 'output window, operand 0']
    #allocation7 [shape = 's32[2]{0}', space=sflag, size = 0x8, scoped, tag = 'scoped memory for tpu_custom_call.1']
    %7 = vsyncpa [#allocation7], 0
    %s8 = scalar_lea.sflag [#allocation7], 1
    %9 = vsyncpa %s8, 0
    loop: start=0, step=1, limit=4
    $region2: #{tpu_custom_call.1} parent=1 // loop_pre_header
      _
    $region3: #{tpu_custom_call.1} parent=1 // loop_header
      %s11 = sphi 0, %s15
      %p12 = scmp.ge.s32.totalorder %s11, 4
      %s18 = sphi 0, %s37
      %s19 = sphi 0, %s33
      %s20 = sphi 0, %s29
      %s21 = sphi 0, %s18
      %s22 = sphi 0, %s19
      %s23 = sphi 0, %s20
      %s24 = sphi 0, %s21
      %s25 = sphi 0, %s22
      %s26 = sphi 0, %s23
      %s40 = sphi 0, %s42
      %s43 = sphi 0, %s40
      %s44 = sphi 0, %s43
      %s60 = sphi 0, %s44
      %s70 = sphi 0, %s72
      %s73 = sphi 0, %s70
      %s74 = sphi 0, %s73
      %s90 = sphi 0, %s74
      %s100 = sphi 0, %s102
      %s103 = sphi 0, %s100
      %s104 = sphi 0, %s103
      %s120 = sphi 0, %s104
    $region4: #{tpu_custom_call.1} parent=1 // loop_header_branch
      %14 = sbr.rel (%p12) target = $region8
    $region5: #{tpu_custom_call.1} parent=1 // loop_body
      %s16 = ssub.s32 %s11, 1
      %s17 = ssub.s32 %s11, 2
      %s27 = sadd.s32 1, %s20
      %p28 = scmp.ge.s32.totalorder %s27, 1
      %s29 = scalar_select %p28, 0, %s27
      %s30 = sadd.s32 1, %s19
      %s31 = scalar_select %p28, %s30, %s19
      %p32 = scmp.ge.s32.totalorder %s31, 2
      %s33 = scalar_select %p32, 0, %s31
      %s34 = sadd.s32 1, %s18
      %s35 = scalar_select %p32, %s34, %s18
      %p36 = scmp.ge.s32.totalorder %s35, 1
      %s37 = scalar_select %p36, 0, %s35
      %s38 = ssub.s32 %s18, %s37
      %p39 = scmp.eq.s32.totalorder %s38, 0
      %s41 = sadd.s32 %s40, 1
      %s42 = scalar_select %p39, %s40, %s41
      %p45 = pneg %p39
      %p46 = scmp.eq.s32.totalorder %s11, 1
      %p47 = por %p45, %p46
      %p48 = scmp.ne.s32.totalorder %s40, %s43
      %p49 = scmp.eq.s32.totalorder %s11, 0
      %p50 = por %p48, %p49
      %p51 = scmp.ne.s32.totalorder %s40, %s43
      %p52 = scmp.eq.s32.totalorder %s16, 1
      %p53 = por %p51, %p52
      %p54 = scmp.ne.s32.totalorder %s43, %s44
      %p55 = scmp.eq.s32.totalorder %s16, 0
      %p56 = por %p54, %p55
      %p57 = scmp.ne.s32.totalorder %s43, %s44
      %p58 = scmp.eq.s32.totalorder %s17, 1
      %p59 = por %p57, %p58
      %p61 = scmp.ne.s32.totalorder %s44, %s60
      %p62 = scmp.eq.s32.totalorder %s17, 0
      %p63 = por %p61, %p62
      %s64 = ssub.s32 1, %s19
      %s65 = smul.u32 %s64, %s20
      %s66 = ssub.s32 1, %s33
      %s67 = smul.u32 %s66, %s29
      %s68 = ssub.s32 %s65, %s67
      %p69 = scmp.eq.s32.totalorder %s68, 0
      %s71 = sadd.s32 %s70, 1
      %s72 = scalar_select %p69, %s70, %s71
      %p75 = pneg %p69
      %p76 = scmp.eq.s32.totalorder %s11, 1
      %p77 = por %p75, %p76
      %p78 = scmp.ne.s32.totalorder %s70, %s73
      %p79 = scmp.eq.s32.totalorder %s11, 0
      %p80 = por %p78, %p79
      %p81 = scmp.ne.s32.totalorder %s70, %s73
      %p82 = scmp.eq.s32.totalorder %s16, 1
      %p83 = por %p81, %p82
      %p84 = scmp.ne.s32.totalorder %s73, %s74
      %p85 = scmp.eq.s32.totalorder %s16, 0
      %p86 = por %p84, %p85
      %p87 = scmp.ne.s32.totalorder %s73, %s74
      %p88 = scmp.eq.s32.totalorder %s17, 1
      %p89 = por %p87, %p88
      %p91 = scmp.ne.s32.totalorder %s74, %s90
      %p92 = scmp.eq.s32.totalorder %s17, 0
      %p93 = por %p91, %p92
      %s94 = smul.u32 %s19, %s20
      %s95 = smul.u32 %s33, %s29
      %s96 = ssub.s32 %s18, %s37
      %s97 = ssub.s32 %s94, %s95
      %s98 = sor.u32 %s96, %s97
      %p99 = scmp.eq.s32.totalorder %s98, 0
      %s101 = sadd.s32 %s100, 1
      %s102 = scalar_select %p99, %s100, %s101
      %p105 = pneg %p99
      %p106 = scmp.eq.s32.totalorder %s11, 1
      %p107 = por %p105, %p106
      %p108 = scmp.ne.s32.totalorder %s100, %s103
      %p109 = scmp.eq.s32.totalorder %s11, 0
      %p110 = por %p108, %p109
      %p111 = scmp.ne.s32.totalorder %s100, %s103
      %p112 = scmp.eq.s32.totalorder %s16, 1
      %p113 = por %p111, %p112
      %p114 = scmp.ne.s32.totalorder %s103, %s104
      %p115 = scmp.eq.s32.totalorder %s16, 0
      %p116 = por %p114, %p115
      %p117 = scmp.ne.s32.totalorder %s103, %s104
      %p118 = scmp.eq.s32.totalorder %s17, 1
      %p119 = por %p117, %p118
      %p121 = scmp.ne.s32.totalorder %s104, %s120
      %p122 = scmp.eq.s32.totalorder %s17, 0
      %p123 = por %p121, %p122
      %p124 = scmp.le.s32.totalorder 1, %s11
      %p125 = scmp.lt.s32.totalorder %s11, 3
      %p126 = pnand %p124, %p125
      %p127 = pneg %p126
      // Predicated region
      $region9: #{tpu_custom_call.1} parent=5 // pred_check
        _
      $region10: #{tpu_custom_call.1} parent=5 // pred_check_branch
        %129 = sbr.rel (%p126) target = $region12
      $region11: #{tpu_custom_call.1} parent=5 // pred_region
        %s130 = ssub.s32 %s11, 1
        // Predicated region
        $region13: #{tpu_custom_call.1} parent=11 // pred_check
          %p131 = pneg %p56
        $region14: #{tpu_custom_call.1} parent=11 // pred_check_branch
          %133 = sbr.rel (%p131) target = $region16
        $region15: #{tpu_custom_call.1} parent=11 // pred_region
          %p134 = scmp.lt.s32.totalorder %s21, 0
          %s135 = scalar_select %p134, %s21, 0
          %s136 = smul.addr %s135, 8
          %s137 = scalar_lea.vmem %s0, %s136
        $region16: #{tpu_custom_call.1} parent=11 // pred_fallthru
          _
      $region12: #{tpu_custom_call.1} parent=5 // pred_fallthru
        _
      %p138 = scmp.lt.s32.totalorder %s11, 2
      // Predicated region
      $region17: #{tpu_custom_call.1} parent=5 // pred_check
        %p139 = pneg %p138
      $region18: #{tpu_custom_call.1} parent=5 // pred_check_branch
        %141 = sbr.rel (%p139) target = $region20
      $region19: #{tpu_custom_call.1} parent=5 // pred_region
        // Predicated region
        $region21: #{tpu_custom_call.1} parent=19 // pred_check
          %p142 = pneg %p80
        $region22: #{tpu_custom_call.1} parent=19 // pred_check_branch
          %144 = sbr.rel (%p142) target = $region24
        $region23: #{tpu_custom_call.1} parent=19 // pred_region
          %s145 = ssub.s32 1, %s19
          %s146 = smul.u32 %s145, %s20
          %s147 = smul.u32 16, %s146
          %p148 = scmp.lt.s32.totalorder %s147, 15
          %s149 = scalar_select %p148, %s147, 15
          %s150 = smul.addr %s149, 8
          %s151 = scalar_lea.vmem %s1, %s150
          %s152 = ssub.s32 1, %s19
          %s153 = smul.u32 %s152, %s20
          %s154 = smul.u32 16, %s153
        $region24: #{tpu_custom_call.1} parent=19 // pred_fallthru
          _
      $region20: #{tpu_custom_call.1} parent=5 // pred_fallthru
        _
      %p155 = scmp.le.s32.totalorder 1, %s11
      %p156 = scmp.lt.s32.totalorder %s11, 3
      %p157 = pnand %p155, %p156
      %p158 = pneg %p157
      // Predicated region
      $region25: #{tpu_custom_call.1} parent=5 // pred_check
        _
      $region26: #{tpu_custom_call.1} parent=5 // pred_check_branch
        %160 = sbr.rel (%p157) target = $region28
      $region27: #{tpu_custom_call.1} parent=5 // pred_region
        %s161 = ssub.s32 %s11, 1
        %p162 = scmp.lt.s32.totalorder %s21, 0
        %s163 = scalar_select %p162, %s21, 0
        %s164 = smul.addr %s163, 8
        %s165 = scalar_lea.vmem %s0, %s164
        %p166 = pneg %p56
        %p167 = pneg %p53
        %s168 = ssub.s32 1, %s22
        %s169 = smul.u32 %s168, %s23
        %s170 = smul.u32 16, %s169
        %p171 = scmp.lt.s32.totalorder %s170, 15
        %s172 = scalar_select %p171, %s170, 15
        %s173 = smul.addr %s172, 8
        %s174 = scalar_lea.vmem %s1, %s173
        %p175 = pneg %p86
        %p176 = pneg %p83
        %p177 = pneg %p116
        %p178 = pneg %p113
        %s179 = sand.u32 %s103, 1
        %s180 = scalar_lea.sflag [#allocation7], %s179
        %s181 = sand.u32 %s103, 1
        %s182 = smul.addr %s181, 8
        %s183 = scalar_lea.vmem [#allocation6], %s182
        %p184 = scmp.lt.s32.totalorder %s21, 0
        %s185 = scalar_select %p184, %s21, 0
        %s186 = smul.addr %s185, 8
        %s187 = scalar_lea.vmem %s0, %s186
        %s188 = ssub.s32 1, %s22
        %s189 = smul.u32 %s188, %s23
        %s190 = smul.u32 16, %s189
        %p191 = scmp.lt.s32.totalorder %s190, 15
        %s192 = scalar_select %p191, %s190, 15
        %s193 = smul.addr %s192, 8
        %s194 = scalar_lea.vmem %s1, %s193
        %s195 = ssub.s32 1, %s22
        %s196 = smul.u32 %s195, %s23
        %s197 = smul.u32 16, %s196
        %s198 = smul.u32 %s22, %s23
        %p199 = scmp.eq.s32.totalorder %s22, 0
        %p200 = scmp.eq.s32.totalorder %s23, 0
        %p201 = pnand %p199, %p200
        %p202 = pneg %p201
        // Predicated region
        $region29: #{tpu_custom_call.1} parent=27 // pred_check
          _
        $region30: #{tpu_custom_call.1} parent=27 // pred_check_branch
          %204 = sbr.rel (%p201) target = $region32
        $region31: #{tpu_custom_call.1} parent=27 // pred_region
          %v205 = vld [vmem:[%s187] sm:$0xff]
          %v206 = vmul.f32 %v205, %v205
          %vm207 = vcmask 261120
          %v208 = vsel %vm207, %v206, 0.0
          %209 = vadd.xlane.f32.xlu0 %v208
          %v210 = vpop.xlane.xlu0 %209
          %v211 = vmax.f32 %v210, 1e-24
          %v212 = vrsqrt.pop %v211
          %v213 = vmul.f32 %v212, %v211
          %v214 = vmul.f32 %v213, %v212
          %v215 = vmul.f32 0.5, %v214
          %v216 = vsub.f32 1.5, %v215
          %v217 = vmul.f32 %v212, %v216
          %vm218 = vweird.f32 %v211
          %vm219 = vweird.f32 %v212
          %vm220 = vmor %vm218, %vm219
          %v221 = vsel %vm220, %v212, %v217
          %v222 = vmul.f32 %v205, %v221
          %223 = vst.msk [vmem:[#allocation2] sm:$0xff] %vm207, %v222
          %vm224 = vcmask 7168
          %225 = vst.msk [vmem:[#allocation4] sm:$0xff] %vm224, -1e+30
          %226 = vst.msk [vmem:[#allocation5] sm:$0xff] %vm224, 0.0
        $region32: #{tpu_custom_call.1} parent=27 // pred_fallthru
          _
        // Predicated region
        $region33: #{tpu_custom_call.1} parent=27 // pred_check
          %p227 = pneg %p199
        $region34: #{tpu_custom_call.1} parent=27 // pred_check_branch
          %229 = sbr.rel (%p227) target = $region36
        $region35: #{tpu_custom_call.1} parent=27 // pred_region
          %v230 = vld [vmem:[%s194] sm:$0xff]
          %v231 = vld [vmem:[%s194 + $0x8] sm:$0xff]
          %v232 = vld [vmem:[%s194 + $0x10] sm:$0xff]
          %v233 = vld [vmem:[%s194 + $0x18] sm:$0xff]
          %v234 = vld [vmem:[%s194 + $0x20] sm:$0xff]
          %v235 = vld [vmem:[%s194 + $0x28] sm:$0xff]
          %v236 = vld [vmem:[%s194 + $0x30] sm:$0xff]
          %v237 = vld [vmem:[%s194 + $0x38] sm:$0xff]
          %v238 = vld [vmem:[%s194 + $0x40] sm:$0xff]
          %v239 = vld [vmem:[%s194 + $0x48] sm:$0xff]
          %v240 = vld [vmem:[%s194 + $0x50] sm:$0xff]
          %v241 = vld [vmem:[%s194 + $0x58] sm:$0xff]
          %v242 = vld [vmem:[%s194 + $0x60] sm:$0xff]
          %v243 = vld [vmem:[%s194 + $0x68] sm:$0xff]
          %v244 = vld [vmem:[%s194 + $0x70] sm:$0xff]
          %v245 = vld [vmem:[%s194 + $0x78] sm:$0xff]
          %v246 = vmul.f32 %v230, %v230
          %v247 = vmul.f32 %v231, %v231
          %v248 = vmul.f32 %v232, %v232
          %v249 = vmul.f32 %v233, %v233
          %v250 = vmul.f32 %v234, %v234
          %v251 = vmul.f32 %v235, %v235
          %v252 = vmul.f32 %v236, %v236
          %v253 = vmul.f32 %v237, %v237
          %v254 = vmul.f32 %v238, %v238
          %v255 = vmul.f32 %v239, %v239
          %v256 = vmul.f32 %v240, %v240
          %v257 = vmul.f32 %v241, %v241
          %v258 = vmul.f32 %v242, %v242
          %v259 = vmul.f32 %v243, %v243
          %v260 = vmul.f32 %v244, %v244
          %v261 = vmul.f32 %v245, %v245
          %vm262 = vcmask 261120
          %v263 = vsel %vm262, %v246, 0.0
          %264 = vadd.xlane.f32.xlu0 %v263
          %v265 = vpop.xlane.xlu0 %264
          %v266 = vsel %vm262, %v247, 0.0
          %267 = vadd.xlane.f32.xlu0 %v266
          %v268 = vpop.xlane.xlu0 %267
          %v269 = vsel %vm262, %v248, 0.0
          %270 = vadd.xlane.f32.xlu0 %v269
          %v271 = vpop.xlane.xlu0 %270
          %v272 = vsel %vm262, %v249, 0.0
          %273 = vadd.xlane.f32.xlu0 %v272
          %v274 = vpop.xlane.xlu0 %273
          %v275 = vsel %vm262, %v250, 0.0
          %276 = vadd.xlane.f32.xlu0 %v275
          %v277 = vpop.xlane.xlu0 %276
          %v278 = vsel %vm262, %v251, 0.0
          %279 = vadd.xlane.f32.xlu0 %v278
          %v280 = vpop.xlane.xlu0 %279
          %v281 = vsel %vm262, %v252, 0.0
          %282 = vadd.xlane.f32.xlu0 %v281
          %v283 = vpop.xlane.xlu0 %282
          %v284 = vsel %vm262, %v253, 0.0
          %285 = vadd.xlane.f32.xlu0 %v284
          %v286 = vpop.xlane.xlu0 %285
          %v287 = vsel %vm262, %v254, 0.0
          %288 = vadd.xlane.f32.xlu0 %v287
          %v289 = vpop.xlane.xlu0 %288
          %v290 = vsel %vm262, %v255, 0.0
          %291 = vadd.xlane.f32.xlu0 %v290
          %v292 = vpop.xlane.xlu0 %291
          %v293 = vsel %vm262, %v256, 0.0
          %294 = vadd.xlane.f32.xlu0 %v293
          %v295 = vpop.xlane.xlu0 %294
          %v296 = vsel %vm262, %v257, 0.0
          %297 = vadd.xlane.f32.xlu0 %v296
          %v298 = vpop.xlane.xlu0 %297
          %v299 = vsel %vm262, %v258, 0.0
          %300 = vadd.xlane.f32.xlu0 %v299
          %v301 = vpop.xlane.xlu0 %300
          %v302 = vsel %vm262, %v259, 0.0
          %303 = vadd.xlane.f32.xlu0 %v302
          %v304 = vpop.xlane.xlu0 %303
          %v305 = vsel %vm262, %v260, 0.0
          %306 = vadd.xlane.f32.xlu0 %v305
          %v307 = vpop.xlane.xlu0 %306
          %v308 = vsel %vm262, %v261, 0.0
          %309 = vadd.xlane.f32.xlu0 %v308
          %v310 = vpop.xlane.xlu0 %309
          %v311 = vmax.f32 %v265, 1e-24
          %v312 = vmax.f32 %v268, 1e-24
          %v313 = vmax.f32 %v271, 1e-24
          %v314 = vmax.f32 %v274, 1e-24
          %v315 = vmax.f32 %v277, 1e-24
          %v316 = vmax.f32 %v280, 1e-24
          %v317 = vmax.f32 %v283, 1e-24
          %v318 = vmax.f32 %v286, 1e-24
          %v319 = vmax.f32 %v289, 1e-24
          %v320 = vmax.f32 %v292, 1e-24
          %v321 = vmax.f32 %v295, 1e-24
          %v322 = vmax.f32 %v298, 1e-24
          %v323 = vmax.f32 %v301, 1e-24
          %v324 = vmax.f32 %v304, 1e-24
          %v325 = vmax.f32 %v307, 1e-24
          %v326 = vmax.f32 %v310, 1e-24
          %v327 = vrsqrt.pop %v311
          %v328 = vmul.f32 %v327, %v311
          %v329 = vmul.f32 %v328, %v327
          %v330 = vmul.f32 0.5, %v329
          %v331 = vsub.f32 1.5, %v330
          %v332 = vmul.f32 %v327, %v331
          %vm333 = vweird.f32 %v311
          %vm334 = vweird.f32 %v327
          %vm335 = vmor %vm333, %vm334
          %v336 = vsel %vm335, %v327, %v332
          %v337 = vrsqrt.pop %v312
          %v338 = vmul.f32 %v337, %v312
          %v339 = vmul.f32 %v338, %v337
          %v340 = vmul.f32 0.5, %v339
          %v341 = vsub.f32 1.5, %v340
          %v342 = vmul.f32 %v337, %v341
          %vm343 = vweird.f32 %v312
          %vm344 = vweird.f32 %v337
          %vm345 = vmor %vm343, %vm344
          %v346 = vsel %vm345, %v337, %v342
          %v347 = vrsqrt.pop %v313
          %v348 = vmul.f32 %v347, %v313
          %v349 = vmul.f32 %v348, %v347
          %v350 = vmul.f32 0.5, %v349
          %v351 = vsub.f32 1.5, %v350
          %v352 = vmul.f32 %v347, %v351
          %vm353 = vweird.f32 %v313
          %vm354 = vweird.f32 %v347
          %vm355 = vmor %vm353, %vm354
          %v356 = vsel %vm355, %v347, %v352
          %v357 = vrsqrt.pop %v314
          %v358 = vmul.f32 %v357, %v314
          %v359 = vmul.f32 %v358, %v357
          %v360 = vmul.f32 0.5, %v359
          %v361 = vsub.f32 1.5, %v360
          %v362 = vmul.f32 %v357, %v361
          %vm363 = vweird.f32 %v314
          %vm364 = vweird.f32 %v357
          %vm365 = vmor %vm363, %vm364
          %v366 = vsel %vm365, %v357, %v362
          %v367 = vrsqrt.pop %v315
          %v368 = vmul.f32 %v367, %v315
          %v369 = vmul.f32 %v368, %v367
          %v370 = vmul.f32 0.5, %v369
          %v371 = vsub.f32 1.5, %v370
          %v372 = vmul.f32 %v367, %v371
          %vm373 = vweird.f32 %v315
          %vm374 = vweird.f32 %v367
          %vm375 = vmor %vm373, %vm374
          %v376 = vsel %vm375, %v367, %v372
          %v377 = vrsqrt.pop %v316
          %v378 = vmul.f32 %v377, %v316
          %v379 = vmul.f32 %v378, %v377
          %v380 = vmul.f32 0.5, %v379
          %v381 = vsub.f32 1.5, %v380
          %v382 = vmul.f32 %v377, %v381
          %vm383 = vweird.f32 %v316
          %vm384 = vweird.f32 %v377
          %vm385 = vmor %vm383, %vm384
          %v386 = vsel %vm385, %v377, %v382
          %v387 = vrsqrt.pop %v317
          %v388 = vmul.f32 %v387, %v317
          %v389 = vmul.f32 %v388, %v387
          %v390 = vmul.f32 0.5, %v389
          %v391 = vsub.f32 1.5, %v390
          %v392 = vmul.f32 %v387, %v391
          %vm393 = vweird.f32 %v317
          %vm394 = vweird.f32 %v387
          %vm395 = vmor %vm393, %vm394
          %v396 = vsel %vm395, %v387, %v392
          %v397 = vrsqrt.pop %v318
          %v398 = vmul.f32 %v397, %v318
          %v399 = vmul.f32 %v398, %v397
          %v400 = vmul.f32 0.5, %v399
          %v401 = vsub.f32 1.5, %v400
          %v402 = vmul.f32 %v397, %v401
          %vm403 = vweird.f32 %v318
          %vm404 = vweird.f32 %v397
          %vm405 = vmor %vm403, %vm404
          %v406 = vsel %vm405, %v397, %v402
          %v407 = vrsqrt.pop %v319
          %v408 = vmul.f32 %v407, %v319
          %v409 = vmul.f32 %v408, %v407
          %v410 = vmul.f32 0.5, %v409
          %v411 = vsub.f32 1.5, %v410
          %v412 = vmul.f32 %v407, %v411
          %vm413 = vweird.f32 %v319
          %vm414 = vweird.f32 %v407
          %vm415 = vmor %vm413, %vm414
          %v416 = vsel %vm415, %v407, %v412
          %v417 = vrsqrt.pop %v320
          %v418 = vmul.f32 %v417, %v320
          %v419 = vmul.f32 %v418, %v417
          %v420 = vmul.f32 0.5, %v419
          %v421 = vsub.f32 1.5, %v420
          %v422 = vmul.f32 %v417, %v421
          %vm423 = vweird.f32 %v320
          %vm424 = vweird.f32 %v417
          %vm425 = vmor %vm423, %vm424
          %v426 = vsel %vm425, %v417, %v422
          %v427 = vrsqrt.pop %v321
          %v428 = vmul.f32 %v427, %v321
          %v429 = vmul.f32 %v428, %v427
          %v430 = vmul.f32 0.5, %v429
          %v431 = vsub.f32 1.5, %v430
          %v432 = vmul.f32 %v427, %v431
          %vm433 = vweird.f32 %v321
          %vm434 = vweird.f32 %v427
          %vm435 = vmor %vm433, %vm434
          %v436 = vsel %vm435, %v427, %v432
          %v437 = vrsqrt.pop %v322
          %v438 = vmul.f32 %v437, %v322
          %v439 = vmul.f32 %v438, %v437
          %v440 = vmul.f32 0.5, %v439
          %v441 = vsub.f32 1.5, %v440
          %v442 = vmul.f32 %v437, %v441
          %vm443 = vweird.f32 %v322
          %vm444 = vweird.f32 %v437
          %vm445 = vmor %vm443, %vm444
          %v446 = vsel %vm445, %v437, %v442
          %v447 = vrsqrt.pop %v323
          %v448 = vmul.f32 %v447, %v323
          %v449 = vmul.f32 %v448, %v447
          %v450 = vmul.f32 0.5, %v449
          %v451 = vsub.f32 1.5, %v450
          %v452 = vmul.f32 %v447, %v451
          %vm453 = vweird.f32 %v323
          %vm454 = vweird.f32 %v447
          %vm455 = vmor %vm453, %vm454
          %v456 = vsel %vm455, %v447, %v452
          %v457 = vrsqrt.pop %v324
          %v458 = vmul.f32 %v457, %v324
          %v459 = vmul.f32 %v458, %v457
          %v460 = vmul.f32 0.5, %v459
          %v461 = vsub.f32 1.5, %v460
          %v462 = vmul.f32 %v457, %v461
          %vm463 = vweird.f32 %v324
          %vm464 = vweird.f32 %v457
          %vm465 = vmor %vm463, %vm464
          %v466 = vsel %vm465, %v457, %v462
          %v467 = vrsqrt.pop %v325
          %v468 = vmul.f32 %v467, %v325
          %v469 = vmul.f32 %v468, %v467
          %v470 = vmul.f32 0.5, %v469
          %v471 = vsub.f32 1.5, %v470
          %v472 = vmul.f32 %v467, %v471
          %vm473 = vweird.f32 %v325
          %vm474 = vweird.f32 %v467
          %vm475 = vmor %vm473, %vm474
          %v476 = vsel %vm475, %v467, %v472
          %v477 = vrsqrt.pop %v326
          %v478 = vmul.f32 %v477, %v326
          %v479 = vmul.f32 %v478, %v477
          %v480 = vmul.f32 0.5, %v479
          %v481 = vsub.f32 1.5, %v480
          %v482 = vmul.f32 %v477, %v481
          %vm483 = vweird.f32 %v326
          %vm484 = vweird.f32 %v477
          %vm485 = vmor %vm483, %vm484
          %v486 = vsel %vm485, %v477, %v482
          %v487 = vmul.f32 %v230, %v336
          %v488 = vmul.f32 %v231, %v346
          %v489 = vmul.f32 %v232, %v356
          %v490 = vmul.f32 %v233, %v366
          %v491 = vmul.f32 %v234, %v376
          %v492 = vmul.f32 %v235, %v386
          %v493 = vmul.f32 %v236, %v396
          %v494 = vmul.f32 %v237, %v406
          %v495 = vmul.f32 %v238, %v416
          %v496 = vmul.f32 %v239, %v426
          %v497 = vmul.f32 %v240, %v436
          %v498 = vmul.f32 %v241, %v446
          %v499 = vmul.f32 %v242, %v456
          %v500 = vmul.f32 %v243, %v466
          %v501 = vmul.f32 %v244, %v476
          %v502 = vmul.f32 %v245, %v486
          %v503 = vld [vmem:[#allocation2] sm:$0xff]
          %v505 = vsel %vm262, %v503, 0
          %v508 = vsel %vm262, %v487, 0
          %v511 = vsel %vm262, %v488, 0
          %v514 = vsel %vm262, %v489, 0
          %v517 = vsel %vm262, %v490, 0
          %v520 = vsel %vm262, %v491, 0
          %v523 = vsel %vm262, %v492, 0
          %v526 = vsel %vm262, %v493, 0
          %v529 = vsel %vm262, %v494, 0
          %v532 = vsel %vm262, %v495, 0
          %v535 = vsel %vm262, %v496, 0
          %v538 = vsel %vm262, %v497, 0
          %v541 = vsel %vm262, %v498, 0
          %v544 = vsel %vm262, %v499, 0
          %v547 = vsel %vm262, %v500, 0
          %v550 = vsel %vm262, %v501, 0
          %v553 = vsel %vm262, %v502, 0
          %555 = vmatpush.xpose.msra.mxu0 %v553
          %556 = vmatpush.xpose.msra.mxu0 %v550
          %557 = vmatpush.xpose.msra.mxu0 %v547
          %558 = vmatpush.xpose.msra.mxu0 %v544
          %559 = vmatpush.xpose.msra.mxu0 %v541
          %560 = vmatpush.xpose.msra.mxu0 %v538
          %561 = vmatpush.xpose.msra.mxu0 %v535
          %562 = vmatpush.xpose.msra.mxu0 %v532
          %563 = vmatpush.xpose.msra.mxu0 %v529
          %564 = vmatpush.xpose.msra.mxu0 %v526
          %565 = vmatpush.xpose.msra.mxu0 %v523
          %566 = vmatpush.xpose.msra.mxu0 %v520
          %567 = vmatpush.xpose.msra.mxu0 %v517
          %568 = vmatpush.xpose.msra.mxu0 %v514
          %569 = vmatpush.xpose.msra.mxu0 %v511
          %570 = vmatpush.xpose.msra.mxu0 %v508
          %571 = vmatmul.f32.gmra.mxu0 %v505
          %v572 = vpop.f32.mrf.mxu0
          %v573 = vadd.f32 0.0, %v572
          %574 = vdwg.mxu0
          %v575 = vmul.f32 %v573, 30.0
          %s576 = smul.u32 %s23, 8
          %s577 = scalar_lea.vmem [#allocation3], %s576
          %578 = vst [vmem:[%s577] sm:$0xff] %v575
          %v579 = vlaneseq
          %v580 = vand.u32 %v579, 127
          %s581 = smul.u32 %s23, 128
          %v582 = vstv %s581
          %v583 = vadd.s32 %v580, %v582
          %vm584 = vcmp.lt.s32.totalorder %v583, 16
          %v585 = vsel %vm584, %v575, -1e+30
          %v586 = vld [vmem:[#allocation4] sm:$0xff]
          %587 = vmax.xlane.f32.xlu0 %v585
          %v588 = vpop.xlane.xlu0 %587
          %v589 = vmax.f32 %v586, %v588
          %v590 = vsub.f32 %v586, %v589
          %v591 = vmul.f32 %v590, 1.442695
          %v592 = vpow.pop %v591
          %v593 = vld [vmem:[#allocation5] sm:$0xff]
          %v594 = vmul.f32 %v592, %v593
          %596 = vset.pattern.permute.xlu0 0
          %597 = vperm.xlu0 %596, %v589
          %v598 = vpop.permute.xlu0 %597
          %v600 = vsub.f32 %v585, %v598
          %v601 = vmul.f32 %v600, 1.442695
          %v602 = vpow.pop %v601
          %603 = vadd.xlane.f32.xlu0 %v602
          %v604 = vpop.xlane.xlu0 %603
          %v605 = vadd.f32 %v594, %v604
          %vm606 = vcmask 7168
          %607 = vst.msk [vmem:[#allocation5] sm:$0xff] %vm606, %v605
          %608 = vst.msk [vmem:[#allocation4] sm:$0xff] %vm606, %v589
        $region36: #{tpu_custom_call.1} parent=27 // pred_fallthru
          _
        %p609 = scmp.eq.s32.totalorder %s22, 1
        // Predicated region
        $region37: #{tpu_custom_call.1} parent=27 // pred_check
          %p610 = pneg %p609
        $region38: #{tpu_custom_call.1} parent=27 // pred_check_branch
          %612 = sbr.rel (%p610) target = $region40
        $region39: #{tpu_custom_call.1} parent=27 // pred_region
          %s613 = smul.u32 %s23, 8
          %s614 = scalar_lea.vmem [#allocation3], %s613
          %v615 = vld [vmem:[%s614] sm:$0xff]
          %v616 = vld [vmem:[#allocation4] sm:$0xff]
          %v617 = vld [vmem:[#allocation5] sm:$0xff]
          %619 = vset.pattern.permute.xlu0 0
          %620 = vperm.xlu0 %619, %v616
          %v621 = vpop.permute.xlu0 %620
          %v623 = vsub.f32 %v615, %v621
          %v624 = vmul.f32 %v623, 1.442695
          %v625 = vpow.pop %v624
          %v626 = vsub.f32 %v615, 12.0
          %v627 = vsub.f32 %v626, %v621
          %v628 = vmul.f32 %v625, 0.99999386
          %630 = vset.pattern.permute.xlu0 0
          %631 = vperm.xlu0 %630, %v617
          %v632 = vpop.permute.xlu0 %631
          %v634 = vsub.f32 %v632, %v628
          %v635 = vlog2.pop %v634
          %v636 = vmul.f32 %v635, 0.6931472
          %v637 = vsub.f32 %v627, %v636
          %638 = vst [vmem:[%s183] sm:$0xff] %v637
        $region40: #{tpu_custom_call.1} parent=27 // pred_fallthru
          _
        %s639 = sand.u32 %s103, 1
        %s640 = scalar_lea.sflag [#allocation7], %s639
        %s641 = sand.u32 %s103, 1
        %s642 = smul.addr %s641, 8
        %s643 = scalar_lea.vmem [#allocation6], %s642
        // Predicated region
        $region41: #{tpu_custom_call.1} parent=27 // pred_check
          %p644 = pneg %p113
        $region42: #{tpu_custom_call.1} parent=27 // pred_check_branch
          %646 = sbr.rel (%p644) target = $region44
        $region43: #{tpu_custom_call.1} parent=27 // pred_region
          %s647 = smul.u32 %s22, %s23
          %649 = vsyncadd %s640, 0
          %s650 = sadd.s32 %s647, %s21
          %s651 = smul.addr %s650, 8
          %s652 = scalar_lea.hbm %s2, %s651
          %s654 = sshll.u32 %s643, 4
          %s655 = int_to_ptr.vmem [resolvable:$true] %s654
          %s656 = sshll.u32 %s652, 4
          %s657 = int_to_ptr.hbm [resolvable:$true] %s656
          %659 = dma.vmem_to_hbm [thread:$0]  %s655, 128, %s657, %s640
        $region44: #{tpu_custom_call.1} parent=27 // pred_fallthru
          _
      $region28: #{tpu_custom_call.1} parent=5 // pred_fallthru
        _
      %p660 = scmp.le.s32.totalorder 2, %s11
      // Predicated region
      $region45: #{tpu_custom_call.1} parent=5 // pred_check
        %p661 = pneg %p660
      $region46: #{tpu_custom_call.1} parent=5 // pred_check_branch
        %663 = sbr.rel (%p661) target = $region48
      $region47: #{tpu_custom_call.1} parent=5 // pred_region
        %s664 = ssub.s32 %s11, 2
        // Predicated region
        $region49: #{tpu_custom_call.1} parent=47 // pred_check
          %p665 = pneg %p119
        $region50: #{tpu_custom_call.1} parent=47 // pred_check_branch
          %667 = sbr.rel (%p665) target = $region52
        $region51: #{tpu_custom_call.1} parent=47 // pred_region
          %s668 = sand.u32 %s104, 1
          %s669 = scalar_lea.sflag [#allocation7], %s668
          %s670 = sand.u32 %s104, 1
          %s671 = smul.addr %s670, 8
          %s672 = scalar_lea.vmem [#allocation6], %s671
          %674 = dma.done %s669, 128
        $region52: #{tpu_custom_call.1} parent=47 // pred_fallthru
          _
      $region48: #{tpu_custom_call.1} parent=5 // pred_fallthru
        _
    $region6: #{tpu_custom_call.1} parent=1 // loop_footer
      %s15 = sadd.s32 1, %s11
    $region7: #{tpu_custom_call.1} parent=1 // loop_footer_branch
      %10 = sbr.rel target = $region3
    $region8: #{tpu_custom_call.1} parent=1 // loop_exit
      _
    %675 = vsyncpa [#allocation7], 1
    %s676 = scalar_lea.sflag [#allocation7], 1
    %677 = vsyncpa %s676, 1

</llo_original>
